<compile_context>
chip_gen: v7x
topology: tpu7x:2x2x1
jax: 0.10.0
libtpu: 0.0.40
codegen_flags: <defaults>
</compile_context>

<pallas_src>
import functools
import math

import jax
import jax.numpy as jnp
from jax.experimental import pallas as pl
from jax.experimental.pallas import tpu as pltpu


def _cdiv(a, b):
    return -(-a // b)


def _pad128(n):
    return _cdiv(n, 128) * 128


def _mini_pointnet_kernel(aggr, n_local, n_global, with_y, bt, n_pts,
                          compute_dtype, x_ref, *refs):
    """One grid step processes `bt` samples (bt * n_pts points, pre-flattened)."""
    n_params = 2 * (n_local + n_global)
    params = refs[:n_params]
    out_refs = refs[n_params:]
    g_ref = out_refs[0]
    y_ref = out_refs[1] if with_y else None

    # x arrives already flattened to (bt*n_pts, C_in) by the wrapper (and in
    # compute_dtype on the bf16 path), so no in-kernel reshape / up-cast.
    h = x_ref[0]

    # Local (per-point) MLP: Linear(+folded BN) + LeakyReLU(0.2).
    # Dot inputs use compute_dtype; accumulation, bias and activation stay f32.
    for i in range(n_local):
        w = params[2 * i][...]
        b = params[2 * i + 1][...]
        h = jnp.dot(h.astype(compute_dtype), w,
                    preferred_element_type=jnp.float32) + b
        h = jnp.maximum(h, 0.2 * h)          # LeakyReLU(0.2): vmul + vmax

    c_local = h.shape[-1]                    # lane-dense (multiple of 128)
    if with_y:
        # Local features written only when requested (lane-dense block).
        y_ref[0] = h.astype(y_ref.dtype)

    # Per-sample pooling over the point axis: one reshape + one reduce.
    h3 = h.reshape(bt, n_pts, c_local)
    if aggr == "max":
        g = jnp.max(h3, axis=1)
    else:
        g = jnp.mean(h3, axis=1)

    # Global MLP, batched over the bt pooled rows.
    for i in range(n_global):
        w = params[2 * (n_local + i)][...]
        b = params[2 * (n_local + i) + 1][...]
        g = jnp.dot(g.astype(compute_dtype), w,
                    preferred_element_type=jnp.float32) + b
        g = jnp.maximum(g, 0.2 * g)

    g_ref[0] = g.astype(g_ref.dtype)


def _chip_params():
    """(is_v7x, per-step VMEM budget for the heuristic, scoped-vmem limit)."""
    try:
        kind = jax.devices()[0].device_kind.lower().replace(" ", "")
    except Exception:
        kind = ""
    is_v7 = ("v7" in kind) or ("tpu7" in kind)
    if is_v7:
        # 64 MiB physical VMEM per TC: keep the working set modest.
        return True, 20 << 20, 32 << 20
    # v5e / v6e: 128 MiB physical; raise the default scoped limit.
    return False, 48 << 20, 64 << 20


def _choose_samples_per_step(B, N, c_pad_max, c_in, x_itemsize, y_itemsize,
                             return_local_out, is_v7, vmem_budget,
                             target_rows=2048):
    """How many samples to fold into one grid step."""
    bt = max(1, min(B, _cdiv(target_rows, max(N, 1))))
    # Per-sample footprint: double-buffered x block + two live f32 activation
    # slabs at the widest layer + (optionally) the double-buffered y block.
    per_sample = 2 * N * c_in * x_itemsize + 2 * N * c_pad_max * 4
    if return_local_out:
        per_sample += 2 * N * c_pad_max * y_itemsize
    bt = max(1, min(bt, vmem_budget // max(per_sample, 1)))
    bt = min(bt, B)
    if is_v7 and B >= 2:
        # v7x has 2 TensorCores: keep >= 2 grid steps so both get work.
        bt = min(bt, _cdiv(B, 2))
    return bt


def mini_pointnet_forward(x, local_params, global_params, aggr="max",
                          return_local_out=False,
                          compute_dtype=jnp.bfloat16, out_dtype=None,
                          samples_per_step=None):
    """x: [B, N, C_in]; params: list of (w [Cin, Cout], b [Cout]) per layer."""
    assert aggr in ("max", "mean")
    B, N, C_in = x.shape
    n_local = len(local_params)
    n_global = len(global_params)
    c_local = local_params[-1][0].shape[1] if n_local else C_in
    c_global = global_params[-1][0].shape[1] if n_global else c_local
    if out_dtype is None:
        out_dtype = compute_dtype
    out_dtype = jnp.dtype(out_dtype)

    # ---- zero-pad every layer width to a multiple of 128 (lane-dense dots,
    # activations and stores); zero rows/cols keep the math exact and the real
    # columns are sliced off the outputs below. ----
    flat_params = []
    prev_w = C_in                      # (padded) width of the previous output
    for (w, b) in list(local_params) + list(global_params):
        w = jnp.asarray(w, jnp.float32)
        b = jnp.asarray(b, jnp.float32)
        cin, cout = w.shape
        assert cin <= prev_w
        cout_p = _pad128(cout)
        w_p = jnp.zeros((prev_w, cout_p), jnp.float32).at[:cin, :cout].set(w)
        b_p = jnp.zeros((1, cout_p), jnp.float32).at[:, :cout].set(
            b.reshape(1, -1))
        flat_params.append(w_p.astype(compute_dtype))
        flat_params.append(b_p)        # bias stays f32 (elementwise path)
        prev_w = cout_p
    c_local_pad = _pad128(c_local) if n_local else C_in
    c_global_pad = _pad128(c_global) if n_global else c_local_pad

    # bf16 fast path: ship x as bf16 (halves the x HBM read; the dot inputs
    # were going to be cast anyway).
    if jnp.dtype(compute_dtype) == jnp.dtype(jnp.bfloat16):
        x = x.astype(jnp.bfloat16)

    is_v7, vmem_budget, vmem_limit = _chip_params()
    c_pad_max = max([C_in, c_local_pad, c_global_pad] +
                    [p.shape[1] for p in flat_params[0::2]]) if flat_params \
        else max(C_in, c_local_pad, c_global_pad)
    bt = samples_per_step or _choose_samples_per_step(
        B, N, c_pad_max, C_in, x.dtype.itemsize, out_dtype.itemsize,
        return_local_out, is_v7, vmem_budget)
    G = _cdiv(B, bt)
    B_pad = G * bt
    if B_pad != B:
        # Zero-padded (masked-off) final grid step instead of shrinking bt.
        x = jnp.pad(x, ((0, B_pad - B), (0, 0), (0, 0)))
    # Pre-flatten so the DMA delivers an already (bt*N, C_in) slab per step.
    x = x.reshape(G, bt * N, C_in)

    kernel = functools.partial(_mini_pointnet_kernel, aggr, n_local, n_global,
                               return_local_out, bt, N, compute_dtype)

    x_spec = pl.BlockSpec((1, bt * N, C_in), lambda i: (i, 0, 0))
    param_specs = [pl.BlockSpec(p.shape, lambda i: (0, 0))
                   for p in flat_params]

    out_shapes = [jax.ShapeDtypeStruct((G, bt, c_global_pad), out_dtype)]
    out_specs = [pl.BlockSpec((1, bt, c_global_pad), lambda i: (i, 0, 0))]
    if return_local_out:
        out_shapes.append(
            jax.ShapeDtypeStruct((G, bt * N, c_local_pad), out_dtype))
        out_specs.append(pl.BlockSpec((1, bt * N, c_local_pad),
                                      lambda i: (i, 0, 0)))

    # Advisory cost hint for XLA's scheduler around the custom call.
    flops = 2 * B_pad * N * sum(
        flat_params[2 * i].shape[0] * flat_params[2 * i].shape[1]
        for i in range(n_local))
    flops += 2 * B_pad * sum(
        flat_params[2 * (n_local + i)].shape[0] *
        flat_params[2 * (n_local + i)].shape[1] for i in range(n_global))
    bytes_accessed = int(x.size) * x.dtype.itemsize
    bytes_accessed += sum(int(p.size) * p.dtype.itemsize for p in flat_params)
    bytes_accessed += B_pad * c_global_pad * out_dtype.itemsize
    if return_local_out:
        bytes_accessed += B_pad * N * c_local_pad * out_dtype.itemsize

    results = pl.pallas_call(
        kernel,
        out_shape=out_shapes,
        grid_spec=pltpu.PrefetchScalarGridSpec(
            num_scalar_prefetch=0,
            grid=(G,),
            in_specs=[x_spec] + param_specs,
            out_specs=out_specs,
        ),
        compiler_params=pltpu.CompilerParams(
            dimension_semantics=("parallel",),
            vmem_limit_bytes=vmem_limit),
        cost_estimate=pl.CostEstimate(
            flops=int(flops), transcendentals=0,
            bytes_accessed=int(bytes_accessed)),
    )(x, *flat_params)

    g = results[0].reshape(B_pad, c_global_pad)[:B, :c_global]
    if return_local_out:
        y = results[1].reshape(B_pad, N, c_local_pad)[:B, :, :c_local]
        return g, y
    return g


# ----------------------- deterministic parameter setup -----------------------

def _init_linear(key, fan_in, fan_out):
    # PyTorch nn.Linear default init: U(-1/sqrt(fan_in), 1/sqrt(fan_in)).
    kw, kb = jax.random.split(key)
    bound = 1.0 / math.sqrt(fan_in)
    w = jax.random.uniform(kw, (fan_in, fan_out), jnp.float32, -bound, bound)
    b = jax.random.uniform(kb, (fan_out,), jnp.float32, -bound, bound)
    return w, b


def build_mlp_params(key, channels, eps=1e-5):
    """Linear + folded BatchNorm (eval: mean=0, var=1, gamma=1, beta=0)."""
    params = []
    for i in range(1, len(channels)):
        key, sub = jax.random.split(key)
        w, b = _init_linear(sub, channels[i - 1], channels[i])
        gamma = jnp.ones((channels[i],), jnp.float32)
        beta = jnp.zeros((channels[i],), jnp.float32)
        running_mean = jnp.zeros((channels[i],), jnp.float32)
        running_var = jnp.ones((channels[i],), jnp.float32)
        scale = gamma / jnp.sqrt(running_var + eps)
        shift = beta - running_mean * scale
        params.append((w * scale[None, :], b * scale + shift))
    return params, key


def _reference_forward(x, local_params, global_params, aggr="max"):
    h = x
    for (w, b) in local_params:
        h = h @ w + b
        h = jnp.where(h > 0, h, 0.2 * h)
    y = h
    g = jnp.max(h, axis=1) if aggr == "max" else jnp.mean(h, axis=1)
    for (w, b) in global_params:
        g = g @ w + b
        g = jnp.where(g > 0, g, 0.2 * g)
    return g, y


if __name__ == "__main__":
    local_nn = [4, 32, 64]
    global_nn = [64, 32]
    B, N = 2, 16

    key = jax.random.PRNGKey(0)
    k_x, k_x2, k_x3, k_p = jax.random.split(key, 4)
    x = jax.random.normal(k_x, (B, N, local_nn[0]), jnp.float32)

    local_params, k_p = build_mlp_params(k_p, local_nn)
    global_params, _ = build_mlp_params(k_p, global_nn)

    ref_g, ref_y = _reference_forward(x, local_params, global_params, "max")

    # 1) Exact-precision path (f32 MXU inputs) with local features requested.
    g32, y32 = mini_pointnet_forward(
        x, local_params, global_params, aggr="max", return_local_out=True,
        compute_dtype=jnp.float32)
    jax.block_until_ready((g32, y32))
    assert g32.shape == (B, global_nn[-1])
    assert y32.shape == (B, N, local_nn[-1])
    assert jnp.allclose(g32, ref_g, atol=1e-5, rtol=1e-5)
    assert jnp.allclose(y32, ref_y, atol=1e-5, rtol=1e-5)

    # 2) Default fast path: bf16 dot inputs, f32 accumulation, no local-feature
    #    writeback (return_local_out=False).
    g_bf = mini_pointnet_forward(x, local_params, global_params, aggr="max")
    jax.block_until_ready(g_bf)
    assert g_bf.shape == (B, global_nn[-1])
    assert jnp.allclose(g_bf.astype(jnp.float32), ref_g, atol=5e-2, rtol=5e-2)

    # 3) Mean aggregation with a batch large enough to exercise multi-sample
    #    (bt > 1) grid steps.
    B2 = 8
    x2 = jax.random.normal(k_x2, (B2, N, local_nn[0]), jnp.float32)
    ref_g2, ref_y2 = _reference_forward(x2, local_params, global_params, "mean")
    g2, y2 = mini_pointnet_forward(
        x2, local_params, global_params, aggr="mean", return_local_out=True,
        compute_dtype=jnp.float32)
    jax.block_until_ready((g2, y2))
    assert jnp.allclose(g2, ref_g2, atol=1e-5, rtol=1e-5)
    assert jnp.allclose(y2, ref_y2, atol=1e-5, rtol=1e-5)

    # 4) Batch that does not divide the samples-per-step: exercises the
    #    zero-padded (masked-off) final grid step.
    B3 = 3
    x3 = jax.random.normal(k_x3, (B3, N, local_nn[0]), jnp.float32)
    ref_g3, ref_y3 = _reference_forward(x3, local_params, global_params, "max")
    g3, y3 = mini_pointnet_forward(
        x3, local_params, global_params, aggr="max", return_local_out=True,
        compute_dtype=jnp.float32, samples_per_step=2)
    jax.block_until_ready((g3, y3))
    assert g3.shape == (B3, global_nn[-1])
    assert jnp.allclose(g3, ref_g3, atol=1e-5, rtol=1e-5)
    assert jnp.allclose(y3, ref_y3, atol=1e-5, rtol=1e-5)

    print("KERNEL_OK")
</pallas_src>

<mosaic_0001>
module attributes {stable_mosaic.version = 11 : i64} {
  func.func @_mini_pointnet_kernel(%arg0: i32, %arg1: memref<1x32x4xf32, #tpu.memory_space<vmem>>, %arg2: memref<4x128xf32, #tpu.memory_space<vmem>>, %arg3: memref<1x128xf32, #tpu.memory_space<vmem>>, %arg4: memref<128x128xf32, #tpu.memory_space<vmem>>, %arg5: memref<1x128xf32, #tpu.memory_space<vmem>>, %arg6: memref<128x128xf32, #tpu.memory_space<vmem>>, %arg7: memref<1x128xf32, #tpu.memory_space<vmem>>, %arg8: memref<1x2x128xf32, #tpu.memory_space<vmem>>, %arg9: memref<1x32x128xf32, #tpu.memory_space<vmem>>) attributes {dimension_semantics = [#tpu.dimension_semantics<parallel>], iteration_bounds = array<i64: 1>, scalar_prefetch = 0 : i64, scratch_operands = 0 : i64, tpu.core_type = #tpu.core_type<tc>, window_params = [{transform_indices = @transform_0, window_bounds = array<i64: 1, 32, 4>}, {pipeline_mode = #tpu.pipeline_mode<synchronous>, transform_indices = @transform_1, window_bounds = array<i64: 4, 128>}, {pipeline_mode = #tpu.pipeline_mode<synchronous>, transform_indices = @transform_2, window_bounds = array<i64: 1, 128>}, {pipeline_mode = #tpu.pipeline_mode<synchronous>, transform_indices = @transform_3, window_bounds = array<i64: 128, 128>}, {pipeline_mode = #tpu.pipeline_mode<synchronous>, transform_indices = @transform_4, window_bounds = array<i64: 1, 128>}, {pipeline_mode = #tpu.pipeline_mode<synchronous>, transform_indices = @transform_5, window_bounds = array<i64: 128, 128>}, {pipeline_mode = #tpu.pipeline_mode<synchronous>, transform_indices = @transform_6, window_bounds = array<i64: 1, 128>}, {transform_indices = @transform_7, window_bounds = array<i64: 1, 2, 128>}, {transform_indices = @transform_8, window_bounds = array<i64: 1, 32, 128>}]} {
    %c0 = arith.constant 0 : index
    %c0_0 = arith.constant 0 : index
    %c0_1 = arith.constant 0 : index
    %0 = vector.load %arg1[%c0, %c0_0, %c0_1] : memref<1x32x4xf32, #tpu.memory_space<vmem>>, vector<1x32x4xf32>
    %1 = vector.shape_cast %0 : vector<1x32x4xf32> to vector<32x4xf32>
    %c0_2 = arith.constant 0 : index
    %c0_3 = arith.constant 0 : index
    %2 = vector.load %arg2[%c0_2, %c0_3] : memref<4x128xf32, #tpu.memory_space<vmem>>, vector<4x128xf32>
    %c0_4 = arith.constant 0 : index
    %c0_5 = arith.constant 0 : index
    %3 = vector.load %arg3[%c0_4, %c0_5] : memref<1x128xf32, #tpu.memory_space<vmem>>, vector<1x128xf32>
    %cst = arith.constant dense<0.000000e+00> : vector<32x128xf32>
    %4 = tpu.matmul %1, %2, %cst {dimension_numbers = #tpu.dot_dimension_numbers<[1], [0], [0], [1], [0, 0, 1, 1], [], []>} : vector<32x4xf32>, vector<4x128xf32>, vector<32x128xf32> -> vector<32x128xf32>
    %5 = vector.broadcast %3 : vector<1x128xf32> to vector<32x128xf32>
    %6 = arith.addf %4, %5 : vector<32x128xf32>
    %cst_6 = arith.constant 2.000000e-01 : f32
    %7 = vector.broadcast %cst_6 : f32 to vector<32x128xf32>
    %8 = arith.mulf %7, %6 : vector<32x128xf32>
    %9 = arith.maximumf %6, %8 : vector<32x128xf32>
    %c0_7 = arith.constant 0 : index
    %c0_8 = arith.constant 0 : index
    %10 = vector.load %arg4[%c0_7, %c0_8] : memref<128x128xf32, #tpu.memory_space<vmem>>, vector<128x128xf32>
    %c0_9 = arith.constant 0 : index
    %c0_10 = arith.constant 0 : index
    %11 = vector.load %arg5[%c0_9, %c0_10] : memref<1x128xf32, #tpu.memory_space<vmem>>, vector<1x128xf32>
    %cst_11 = arith.constant dense<0.000000e+00> : vector<32x128xf32>
    %12 = tpu.matmul %9, %10, %cst_11 {dimension_numbers = #tpu.dot_dimension_numbers<[1], [0], [0], [1], [0, 0, 1, 1], [], []>} : vector<32x128xf32>, vector<128x128xf32>, vector<32x128xf32> -> vector<32x128xf32>
    %13 = vector.broadcast %11 : vector<1x128xf32> to vector<32x128xf32>
    %14 = arith.addf %12, %13 : vector<32x128xf32>
    %cst_12 = arith.constant 2.000000e-01 : f32
    %15 = vector.broadcast %cst_12 : f32 to vector<32x128xf32>
    %16 = arith.mulf %15, %14 : vector<32x128xf32>
    %17 = arith.maximumf %14, %16 : vector<32x128xf32>
    %c0_13 = arith.constant 0 : index
    %c0_14 = arith.constant 0 : index
    %c0_15 = arith.constant 0 : index
    %18 = vector.load %arg9[%c0_13, %c0_14, %c0_15] : memref<1x32x128xf32, #tpu.memory_space<vmem>>, vector<1x32x128xf32>
    %19 = vector.shape_cast %18 : vector<1x32x128xf32> to vector<32x128xf32>
    %20 = vector.shape_cast %17 : vector<32x128xf32> to vector<1x32x128xf32>
    tpu.vector_store %arg9[%c0_13, %c0_14, %c0_15], %20 {strides = array<i32>} : memref<1x32x128xf32, #tpu.memory_space<vmem>>, vector<1x32x128xf32>,
    %21 = vector.shape_cast %17 : vector<32x128xf32> to vector<2x16x128xf32>
    %cst_16 = arith.constant dense<0xFF800000> : vector<2x128xf32>
    %22 = vector.multi_reduction <maximumf>, %21, %cst_16 [1] : vector<2x16x128xf32> to vector<2x128xf32>
    %c0_17 = arith.constant 0 : index
    %c0_18 = arith.constant 0 : index
    %23 = vector.load %arg6[%c0_17, %c0_18] : memref<128x128xf32, #tpu.memory_space<vmem>>, vector<128x128xf32>
    %c0_19 = arith.constant 0 : index
    %c0_20 = arith.constant 0 : index
    %24 = vector.load %arg7[%c0_19, %c0_20] : memref<1x128xf32, #tpu.memory_space<vmem>>, vector<1x128xf32>
    %cst_21 = arith.constant dense<0.000000e+00> : vector<2x128xf32>
    %25 = tpu.matmul %22, %23, %cst_21 {dimension_numbers = #tpu.dot_dimension_numbers<[1], [0], [0], [1], [0, 0, 1, 1], [], []>} : vector<2x128xf32>, vector<128x128xf32>, vector<2x128xf32> -> vector<2x128xf32>
    %26 = vector.broadcast %24 : vector<1x128xf32> to vector<2x128xf32>
    %27 = arith.addf %25, %26 : vector<2x128xf32>
    %cst_22 = arith.constant 2.000000e-01 : f32
    %28 = vector.broadcast %cst_22 : f32 to vector<2x128xf32>
    %29 = arith.mulf %28, %27 : vector<2x128xf32>
    %30 = arith.maximumf %27, %29 : vector<2x128xf32>
    %c0_23 = arith.constant 0 : index
    %c0_24 = arith.constant 0 : index
    %c0_25 = arith.constant 0 : index
    %31 = vector.load %arg8[%c0_23, %c0_24, %c0_25] : memref<1x2x128xf32, #tpu.memory_space<vmem>>, vector<1x2x128xf32>
    %32 = vector.shape_cast %31 : vector<1x2x128xf32> to vector<2x128xf32>
    %33 = vector.shape_cast %30 : vector<2x128xf32> to vector<1x2x128xf32>
    tpu.vector_store %arg8[%c0_23, %c0_24, %c0_25], %33 {strides = array<i32>} : memref<1x2x128xf32, #tpu.memory_space<vmem>>, vector<1x2x128xf32>,
    return
  }
  func.func @transform_0(%arg0: i32) -> (i32, i32, i32) {
    %c0_i32 = arith.constant 0 : i32
    %c0_i32_0 = arith.constant 0 : i32
    %c0_i32_1 = arith.constant 0 : i32
    return %arg0, %c0_i32, %c0_i32_0 : i32, i32, i32
  }
  func.func @transform_1(%arg0: i32) -> (i32, i32) {
    %c0_i32 = arith.constant 0 : i32
    %c0_i32_0 = arith.constant 0 : i32
    %c0_i32_1 = arith.constant 0 : i32
    return %c0_i32, %c0_i32_0 : i32, i32
  }
  func.func @transform_2(%arg0: i32) -> (i32, i32) {
    %c0_i32 = arith.constant 0 : i32
    %c0_i32_0 = arith.constant 0 : i32
    %c0_i32_1 = arith.constant 0 : i32
    return %c0_i32, %c0_i32_0 : i32, i32
  }
  func.func @transform_3(%arg0: i32) -> (i32, i32) {
    %c0_i32 = arith.constant 0 : i32
    %c0_i32_0 = arith.constant 0 : i32
    %c0_i32_1 = arith.constant 0 : i32
    return %c0_i32, %c0_i32_0 : i32, i32
  }
  func.func @transform_4(%arg0: i32) -> (i32, i32) {
    %c0_i32 = arith.constant 0 : i32
    %c0_i32_0 = arith.constant 0 : i32
    %c0_i32_1 = arith.constant 0 : i32
    return %c0_i32, %c0_i32_0 : i32, i32
  }
  func.func @transform_5(%arg0: i32) -> (i32, i32) {
    %c0_i32 = arith.constant 0 : i32
    %c0_i32_0 = arith.constant 0 : i32
    %c0_i32_1 = arith.constant 0 : i32
    return %c0_i32, %c0_i32_0 : i32, i32
  }
  func.func @transform_6(%arg0: i32) -> (i32, i32) {
    %c0_i32 = arith.constant 0 : i32
    %c0_i32_0 = arith.constant 0 : i32
    %c0_i32_1 = arith.constant 0 : i32
    return %c0_i32, %c0_i32_0 : i32, i32
  }
  func.func @transform_7(%arg0: i32) -> (i32, i32, i32) {
    %c0_i32 = arith.constant 0 : i32
    %c0_i32_0 = arith.constant 0 : i32
    %c0_i32_1 = arith.constant 0 : i32
    return %arg0, %c0_i32, %c0_i32_0 : i32, i32, i32
  }
  func.func @transform_8(%arg0: i32) -> (i32, i32, i32) {
    %c0_i32 = arith.constant 0 : i32
    %c0_i32_0 = arith.constant 0 : i32
    %c0_i32_1 = arith.constant 0 : i32
    return %arg0, %c0_i32, %c0_i32_0 : i32, i32, i32
  }
}

</mosaic_0001>

<llo_original>
// kernel: tpu_custom_call.1
$region0: #{tpu_custom_call.1}
  #allocation0 [shape = 'u32[]', space=smem, size = 0x4, offset = 0x4, fixed_abs, tag = 'smem constant byte address 0x4 - core index']
  #allocation1 [shape = 'u32[144,128]{1,0:T(1,128)}', space=vmem, size = 0x12000, scoped, tag = 'internal scratch']
  %s0 = inlined_call_operand.hbm [shape: f32[1,32,4], index: 0, kind: input, shape index: {}]
  %s1 = inlined_call_operand.hbm [shape: f32[4,128], index: 1, kind: input, shape index: {}]
  %s2 = inlined_call_operand.hbm [shape: f32[1,128], index: 2, kind: input, shape index: {}]
  %s3 = inlined_call_operand.hbm [shape: f32[128,128], index: 3, kind: input, shape index: {}]
  %s4 = inlined_call_operand.hbm [shape: f32[1,128], index: 4, kind: input, shape index: {}]
  %s5 = inlined_call_operand.hbm [shape: f32[128,128], index: 5, kind: input, shape index: {}]
  %s6 = inlined_call_operand.hbm [shape: f32[1,128], index: 6, kind: input, shape index: {}]
  %s7 = inlined_call_operand.hbm [shape: f32[1,2,128], index: 7, kind: output, shape index: {0}]
  %s8 = inlined_call_operand.hbm [shape: f32[1,32,128], index: 8, kind: output, shape index: {1}]
  %9 = xla_tuple %s7, %s8
  %s10 = sld [smem:[#allocation0]]
  $region74: #{tpu_custom_call.1} parent=0
    _
  %s12 = ssub.s32 1, %s10
  %s13 = scalar_select 0, %s12, %s10
  $region1: #{tpu_custom_call.1} parent=0
    #allocation2 [shape = 'u8[16384]{0}', space=vmem, size = 0x4000, scoped, tag = 'input window, operand 0, single buffered']
    #allocation3 [shape = 's32[1]{0}', space=sflag, size = 0x4, scoped, tag = 'scoped memory for tpu_custom_call.1']
    #allocation4 [shape = 's32[1]{0}', space=sflag, size = 0x4, scoped, tag = 'scoped memory for tpu_custom_call.1']
    #allocation5 [shape = 'u8[2048]{0}', space=vmem, size = 0x800, scoped, tag = 'input window, operand 1, single buffered']
    #allocation6 [shape = 's32[1]{0}', space=sflag, size = 0x4, scoped, tag = 'scoped memory for tpu_custom_call.1']
    #allocation7 [shape = 'u8[512]{0}', space=vmem, size = 0x400, scoped, tag = 'input window, operand 2, single buffered']
    #allocation8 [shape = 'u8[65536]{0}', space=vmem, size = 0x10000, scoped, tag = 'input window, operand 3, single buffered']
    #allocation9 [shape = 's32[1]{0}', space=sflag, size = 0x4, scoped, tag = 'scoped memory for tpu_custom_call.1']
    #allocation10 [shape = 'u8[512]{0}', space=vmem, size = 0x400, scoped, tag = 'input window, operand 4, single buffered']
    #allocation11 [shape = 'u8[65536]{0}', space=vmem, size = 0x10000, scoped, tag = 'input window, operand 5, single buffered']
    #allocation12 [shape = 's32[1]{0}', space=sflag, size = 0x4, scoped, tag = 'scoped memory for tpu_custom_call.1']
    #allocation13 [shape = 'u8[512]{0}', space=vmem, size = 0x400, scoped, tag = 'input window, operand 6, single buffered']
    #allocation14 [shape = 'u8[1024]{0}', space=vmem, size = 0x400, scoped, tag = 'output window, operand 0, single buffered']
    #allocation15 [shape = 'u8[16384]{0}', space=vmem, size = 0x4000, scoped, tag = 'output window, operand 1, single buffered']
    #allocation16 [shape = 's32[1]{0}', space=sflag, size = 0x4, scoped, tag = 'scoped memory for tpu_custom_call.1']
    %14 = vsyncpa [#allocation3], 0
    %15 = vsyncpa [#allocation6], 0
    %16 = vsyncpa [#allocation9], 0
    %17 = vsyncpa [#allocation12], 0
    %18 = vsyncpa [#allocation4], 0
    %19 = vsyncpa [#allocation16], 0
    // Predicated region
    $region2: #{tpu_custom_call.1} parent=1 // pred_check
      _
    $region3: #{tpu_custom_call.1} parent=1 // pred_check_branch
      %21 = sbr.rel (0) target = $region5
    $region4: #{tpu_custom_call.1} parent=1 // pred_region
      %s23 = ssub.s32 512, 512
      %24 = vsyncadd [#allocation3], %s23
      %s25 = sshll.u32 [#allocation2], 4
      %s26 = int_to_ptr.vmem [resolvable:$true] %s25
      %31 = dma.hbm_to_vmem [thread:$0]  %s0, 512, %s26, [#allocation3], 128, 128, 8
    $region5: #{tpu_custom_call.1} parent=1 // pred_fallthru
      _
    // Predicated region
    $region6: #{tpu_custom_call.1} parent=1 // pred_check
      _
    $region7: #{tpu_custom_call.1} parent=1 // pred_check_branch
      %33 = sbr.rel (0) target = $region9
    $region8: #{tpu_custom_call.1} parent=1 // pred_region
      %s35 = ssub.s32 64, 64
      %36 = vsyncadd [#allocation6], %s35
      %s38 = sshll.u32 [#allocation5], 4
      %s39 = int_to_ptr.vmem [resolvable:$true] %s38
      %41 = dma.hbm_to_vmem [thread:$0]  %s1, 64, %s39, [#allocation6]
    $region9: #{tpu_custom_call.1} parent=1 // pred_fallthru
      _
    // Predicated region
    $region10: #{tpu_custom_call.1} parent=1 // pred_check
      _
    $region11: #{tpu_custom_call.1} parent=1 // pred_check_branch
      %43 = sbr.rel (0) target = $region13
    $region12: #{tpu_custom_call.1} parent=1 // pred_region
      %s45 = ssub.s32 16, 16
      %46 = vsyncadd [#allocation6], %s45
      %s48 = sshll.u32 [#allocation7], 4
      %s49 = int_to_ptr.vmem [resolvable:$true] %s48
      %51 = dma.hbm_to_vmem [thread:$0]  %s2, 16, %s49, [#allocation6]
    $region13: #{tpu_custom_call.1} parent=1 // pred_fallthru
      _
    // Predicated region
    $region14: #{tpu_custom_call.1} parent=1 // pred_check
      _
    $region15: #{tpu_custom_call.1} parent=1 // pred_check_branch
      %53 = sbr.rel (0) target = $region17
    $region16: #{tpu_custom_call.1} parent=1 // pred_region
      %s55 = ssub.s32 2048, 2048
      %56 = vsyncadd [#allocation9], %s55
      %s57 = sshll.u32 [#allocation8], 4
      %s58 = int_to_ptr.vmem [resolvable:$true] %s57
      %63 = dma.hbm_to_vmem [thread:$0]  %s3, 2048, %s58, [#allocation9], 128, 128, 8
    $region17: #{tpu_custom_call.1} parent=1 // pred_fallthru
      _
    // Predicated region
    $region18: #{tpu_custom_call.1} parent=1 // pred_check
      _
    $region19: #{tpu_custom_call.1} parent=1 // pred_check_branch
      %65 = sbr.rel (0) target = $region21
    $region20: #{tpu_custom_call.1} parent=1 // pred_region
      %s67 = ssub.s32 16, 16
      %68 = vsyncadd [#allocation9], %s67
      %s70 = sshll.u32 [#allocation10], 4
      %s71 = int_to_ptr.vmem [resolvable:$true] %s70
      %73 = dma.hbm_to_vmem [thread:$0]  %s4, 16, %s71, [#allocation9]
    $region21: #{tpu_custom_call.1} parent=1 // pred_fallthru
      _
    // Predicated region
    $region22: #{tpu_custom_call.1} parent=1 // pred_check
      _
    $region23: #{tpu_custom_call.1} parent=1 // pred_check_branch
      %75 = sbr.rel (0) target = $region25
    $region24: #{tpu_custom_call.1} parent=1 // pred_region
      %s77 = ssub.s32 2048, 2048
      %78 = vsyncadd [#allocation12], %s77
      %s79 = sshll.u32 [#allocation11], 4
      %s80 = int_to_ptr.vmem [resolvable:$true] %s79
      %85 = dma.hbm_to_vmem [thread:$0]  %s5, 2048, %s80, [#allocation12], 128, 128, 8
    $region25: #{tpu_custom_call.1} parent=1 // pred_fallthru
      _
    // Predicated region
    $region26: #{tpu_custom_call.1} parent=1 // pred_check
      _
    $region27: #{tpu_custom_call.1} parent=1 // pred_check_branch
      %87 = sbr.rel (0) target = $region29
    $region28: #{tpu_custom_call.1} parent=1 // pred_region
      %s89 = ssub.s32 16, 16
      %90 = vsyncadd [#allocation12], %s89
      %s92 = sshll.u32 [#allocation13], 4
      %s93 = int_to_ptr.vmem [resolvable:$true] %s92
      %95 = dma.hbm_to_vmem [thread:$0]  %s6, 16, %s93, [#allocation12]
    $region29: #{tpu_custom_call.1} parent=1 // pred_fallthru
      _
    // Predicated region
    $region30: #{tpu_custom_call.1} parent=1 // pred_check
      _
    $region31: #{tpu_custom_call.1} parent=1 // pred_check_branch
      %97 = sbr.rel (0) target = $region33
    $region32: #{tpu_custom_call.1} parent=1 // pred_region
      %98 = dma.done [#allocation3], 512
    $region33: #{tpu_custom_call.1} parent=1 // pred_fallthru
      _
    // Predicated region
    $region34: #{tpu_custom_call.1} parent=1 // pred_check
      _
    $region35: #{tpu_custom_call.1} parent=1 // pred_check_branch
      %100 = sbr.rel (0) target = $region37
    $region36: #{tpu_custom_call.1} parent=1 // pred_region
      %101 = dma.done [#allocation6], 64
    $region37: #{tpu_custom_call.1} parent=1 // pred_fallthru
      _
    // Predicated region
    $region38: #{tpu_custom_call.1} parent=1 // pred_check
      _
    $region39: #{tpu_custom_call.1} parent=1 // pred_check_branch
      %103 = sbr.rel (0) target = $region41
    $region40: #{tpu_custom_call.1} parent=1 // pred_region
      %104 = dma.done [#allocation6], 16
    $region41: #{tpu_custom_call.1} parent=1 // pred_fallthru
      _
    // Predicated region
    $region42: #{tpu_custom_call.1} parent=1 // pred_check
      _
    $region43: #{tpu_custom_call.1} parent=1 // pred_check_branch
      %106 = sbr.rel (0) target = $region45
    $region44: #{tpu_custom_call.1} parent=1 // pred_region
      %107 = dma.done [#allocation9], 2048
    $region45: #{tpu_custom_call.1} parent=1 // pred_fallthru
      _
    // Predicated region
    $region46: #{tpu_custom_call.1} parent=1 // pred_check
      _
    $region47: #{tpu_custom_call.1} parent=1 // pred_check_branch
      %109 = sbr.rel (0) target = $region49
    $region48: #{tpu_custom_call.1} parent=1 // pred_region
      %110 = dma.done [#allocation9], 16
    $region49: #{tpu_custom_call.1} parent=1 // pred_fallthru
      _
    // Predicated region
    $region50: #{tpu_custom_call.1} parent=1 // pred_check
      _
    $region51: #{tpu_custom_call.1} parent=1 // pred_check_branch
      %112 = sbr.rel (0) target = $region53
    $region52: #{tpu_custom_call.1} parent=1 // pred_region
      %113 = dma.done [#allocation12], 2048
    $region53: #{tpu_custom_call.1} parent=1 // pred_fallthru
      _
    // Predicated region
    $region54: #{tpu_custom_call.1} parent=1 // pred_check
      _
    $region55: #{tpu_custom_call.1} parent=1 // pred_check_branch
      %115 = sbr.rel (0) target = $region57
    $region56: #{tpu_custom_call.1} parent=1 // pred_region
      %116 = dma.done [#allocation12], 16
    $region57: #{tpu_custom_call.1} parent=1 // pred_fallthru
      _
    %v117 = vld [vmem:[#allocation2] sm:$0xff]
    %v118 = vld [vmem:[#allocation2 + $0x8] sm:$0xff]
    %v119 = vld [vmem:[#allocation2 + $0x10] sm:$0xff]
    %v120 = vld [vmem:[#allocation2 + $0x18] sm:$0xff]
    %v121 = vld [vmem:[#allocation5] sm:$0xf]
    %v122 = vld [vmem:[#allocation7] sm:$0x1]
    %v124 = vlaneseq
    %v125 = vshrl.u32 %v124, 7
    %v126 = vsub.s32 0, %v125
    %v127 = vrot.slane %v122, %v126
    %vm129 = vcmask 31744
    %v131 = vsel %vm129, %v117, 0
    %v134 = vsel %vm129, %v118, 0
    %v137 = vsel %vm129, %v119, 0
    %v140 = vsel %vm129, %v120, 0
    %vm142 = vcmask 1043456
    %v144 = vsel %vm142, %v121, 0
    %146 = vmatprep.subr.mxu0 0.0
    %147 = vmatpush1.msra.mxu0 %v144
    %148 = vmatprep.subr.mxu0 0.0
    %149 = vmatpush1.msra.mxu0 0.0
    %150 = vmatprep.subr.mxu0 0.0
    %151 = vmatpush1.msra.mxu0 0.0
    %152 = vmatprep.subr.mxu0 0.0
    %153 = vmatpush1.msra.mxu0 0.0
    %154 = vmatprep.subr.mxu0 0.0
    %155 = vmatpush1.msra.mxu0 0.0
    %156 = vmatprep.subr.mxu0 0.0
    %157 = vmatpush1.msra.mxu0 0.0
    %158 = vmatprep.subr.mxu0 0.0
    %159 = vmatpush1.msra.mxu0 0.0
    %160 = vmatprep.subr.mxu0 0.0
    %161 = vmatpush1.msra.mxu0 0.0
    %162 = vmatprep.subr.mxu0 0.0
    %163 = vmatpush1.msra.mxu0 0.0
    %164 = vmatprep.subr.mxu0 0.0
    %165 = vmatpush1.msra.mxu0 0.0
    %166 = vmatprep.subr.mxu0 0.0
    %167 = vmatpush1.msra.mxu0 0.0
    %168 = vmatprep.subr.mxu0 0.0
    %169 = vmatpush1.msra.mxu0 0.0
    %170 = vmatprep.subr.mxu0 0.0
    %171 = vmatpush1.msra.mxu0 0.0
    %172 = vmatprep.subr.mxu0 0.0
    %173 = vmatpush1.msra.mxu0 0.0
    %174 = vmatprep.subr.mxu0 0.0
    %175 = vmatpush1.msra.mxu0 0.0
    %176 = vmatprep.subr.mxu0 0.0
    %177 = vmatpush1.msra.mxu0 0.0
    %178 = vmatprep.subr.mxu0 0.0
    %179 = vmatpush1.msra.mxu0 0.0
    %180 = vmatprep.subr.mxu0 0.0
    %181 = vmatpush1.msra.mxu0 0.0
    %182 = vmatprep.subr.mxu0 0.0
    %183 = vmatpush1.msra.mxu0 0.0
    %184 = vmatprep.subr.mxu0 0.0
    %185 = vmatpush1.msra.mxu0 0.0
    %186 = vmatprep.subr.mxu0 0.0
    %187 = vmatpush1.msra.mxu0 0.0
    %188 = vmatprep.subr.mxu0 0.0
    %189 = vmatpush1.msra.mxu0 0.0
    %190 = vmatprep.subr.mxu0 0.0
    %191 = vmatpush1.msra.mxu0 0.0
    %192 = vmatprep.subr.mxu0 0.0
    %193 = vmatpush1.msra.mxu0 0.0
    %194 = vmatprep.subr.mxu0 0.0
    %195 = vmatpush1.msra.mxu0 0.0
    %196 = vmatprep.subr.mxu0 0.0
    %197 = vmatpush1.msra.mxu0 0.0
    %198 = vmatprep.subr.mxu0 0.0
    %199 = vmatpush1.msra.mxu0 0.0
    %200 = vmatprep.subr.mxu0 0.0
    %201 = vmatpush1.msra.mxu0 0.0
    %202 = vmatprep.subr.mxu0 0.0
    %203 = vmatpush1.msra.mxu0 0.0
    %204 = vmatprep.subr.mxu0 0.0
    %205 = vmatpush1.msra.mxu0 0.0
    %206 = vmatprep.subr.mxu0 0.0
    %207 = vmatpush1.msra.mxu0 0.0
    %208 = vmatprep.subr.mxu0 0.0
    %209 = vmatpush1.msra.mxu0 0.0
    %210 = vmatprep.mubr.f32.mxu0 0.0
    %211 = vmatmul.mubr.f32.gmra.mrb[0].mxu0 %v131
    %v212 = vpop.f32.mrb[0].mxu0
    %v213 = vadd.f32 %v127, %v212
    %v214 = vpop.f32.mrb[0].mxu0
    %215 = vmatprep.mubr.f32.mxu0 0.0
    %216 = vmatmul.mubr.f32.gmra.mrb[0].mxu0 %v134
    %v217 = vpop.f32.mrb[0].mxu0
    %v218 = vadd.f32 %v127, %v217
    %v219 = vpop.f32.mrb[0].mxu0
    %220 = vmatprep.mubr.f32.mxu0 0.0
    %221 = vmatmul.mubr.f32.gmra.mrb[0].mxu0 %v137
    %v222 = vpop.f32.mrb[0].mxu0
    %v223 = vadd.f32 %v127, %v222
    %v224 = vpop.f32.mrb[0].mxu0
    %225 = vmatprep.mubr.f32.mxu0 0.0
    %226 = vmatmul.mubr.f32.gmra.mrb[0].mxu0 %v140
    %v227 = vpop.f32.mrb[0].mxu0
    %v228 = vadd.f32 %v127, %v227
    %v229 = vpop.f32.mrb[0].mxu0
    %230 = vdwg.mxu0
    %v231 = vmul.f32 %v213, 0.2
    %v232 = vmul.f32 %v218, 0.2
    %v233 = vmul.f32 %v223, 0.2
    %v234 = vmul.f32 %v228, 0.2
    %v235 = vmax.f32 %v213, %v231
    %v236 = vmax.f32 %v218, %v232
    %v237 = vmax.f32 %v223, %v233
    %v238 = vmax.f32 %v228, %v234
    %v239 = vld [vmem:[#allocation8] sm:$0xff]
    %v240 = vld [vmem:[#allocation8 + $0x8] sm:$0xff]
    %v241 = vld [vmem:[#allocation8 + $0x10] sm:$0xff]
    %v242 = vld [vmem:[#allocation8 + $0x18] sm:$0xff]
    %v243 = vld [vmem:[#allocation8 + $0x20] sm:$0xff]
    %v244 = vld [vmem:[#allocation8 + $0x28] sm:$0xff]
    %v245 = vld [vmem:[#allocation8 + $0x30] sm:$0xff]
    %v246 = vld [vmem:[#allocation8 + $0x38] sm:$0xff]
    %v247 = vld [vmem:[#allocation8 + $0x40] sm:$0xff]
    %v248 = vld [vmem:[#allocation8 + $0x48] sm:$0xff]
    %v249 = vld [vmem:[#allocation8 + $0x50] sm:$0xff]
    %v250 = vld [vmem:[#allocation8 + $0x58] sm:$0xff]
    %v251 = vld [vmem:[#allocation8 + $0x60] sm:$0xff]
    %v252 = vld [vmem:[#allocation8 + $0x68] sm:$0xff]
    %v253 = vld [vmem:[#allocation8 + $0x70] sm:$0xff]
    %v254 = vld [vmem:[#allocation8 + $0x78] sm:$0xff]
    %v255 = vld [vmem:[#allocation10] sm:$0x1]
    %v257 = vlaneseq
    %v258 = vshrl.u32 %v257, 7
    %v259 = vsub.s32 0, %v258
    %v260 = vrot.slane %v255, %v259
    %262 = vmatprep.subr.mxu0 0.0
    %263 = vmatpush1.msra.mxu0 %v239
    %264 = vmatprep.subr.mxu0 0.0
    %265 = vmatpush1.msra.mxu0 %v240
    %266 = vmatprep.subr.mxu0 0.0
    %267 = vmatpush1.msra.mxu0 %v241
    %268 = vmatprep.subr.mxu0 0.0
    %269 = vmatpush1.msra.mxu0 %v242
    %270 = vmatprep.subr.mxu0 0.0
    %271 = vmatpush1.msra.mxu0 %v243
    %272 = vmatprep.subr.mxu0 0.0
    %273 = vmatpush1.msra.mxu0 %v244
    %274 = vmatprep.subr.mxu0 0.0
    %275 = vmatpush1.msra.mxu0 %v245
    %276 = vmatprep.subr.mxu0 0.0
    %277 = vmatpush1.msra.mxu0 %v246
    %278 = vmatprep.subr.mxu0 0.0
    %279 = vmatpush1.msra.mxu0 %v247
    %280 = vmatprep.subr.mxu0 0.0
    %281 = vmatpush1.msra.mxu0 %v248
    %282 = vmatprep.subr.mxu0 0.0
    %283 = vmatpush1.msra.mxu0 %v249
    %284 = vmatprep.subr.mxu0 0.0
    %285 = vmatpush1.msra.mxu0 %v250
    %286 = vmatprep.subr.mxu0 0.0
    %287 = vmatpush1.msra.mxu0 %v251
    %288 = vmatprep.subr.mxu0 0.0
    %289 = vmatpush1.msra.mxu0 %v252
    %290 = vmatprep.subr.mxu0 0.0
    %291 = vmatpush1.msra.mxu0 %v253
    %292 = vmatprep.subr.mxu0 0.0
    %293 = vmatpush1.msra.mxu0 %v254
    %294 = vmatprep.subr.mxu0 0.0
    %295 = vmatpush1.msra.mxu0 0.0
    %296 = vmatprep.subr.mxu0 0.0
    %297 = vmatpush1.msra.mxu0 0.0
    %298 = vmatprep.subr.mxu0 0.0
    %299 = vmatpush1.msra.mxu0 0.0
    %300 = vmatprep.subr.mxu0 0.0
    %301 = vmatpush1.msra.mxu0 0.0
    %302 = vmatprep.subr.mxu0 0.0
    %303 = vmatpush1.msra.mxu0 0.0
    %304 = vmatprep.subr.mxu0 0.0
    %305 = vmatpush1.msra.mxu0 0.0
    %306 = vmatprep.subr.mxu0 0.0
    %307 = vmatpush1.msra.mxu0 0.0
    %308 = vmatprep.subr.mxu0 0.0
    %309 = vmatpush1.msra.mxu0 0.0
    %310 = vmatprep.subr.mxu0 0.0
    %311 = vmatpush1.msra.mxu0 0.0
    %312 = vmatprep.subr.mxu0 0.0
    %313 = vmatpush1.msra.mxu0 0.0
    %314 = vmatprep.subr.mxu0 0.0
    %315 = vmatpush1.msra.mxu0 0.0
    %316 = vmatprep.subr.mxu0 0.0
    %317 = vmatpush1.msra.mxu0 0.0
    %318 = vmatprep.subr.mxu0 0.0
    %319 = vmatpush1.msra.mxu0 0.0
    %320 = vmatprep.subr.mxu0 0.0
    %321 = vmatpush1.msra.mxu0 0.0
    %322 = vmatprep.subr.mxu0 0.0
    %323 = vmatpush1.msra.mxu0 0.0
    %324 = vmatprep.subr.mxu0 0.0
    %325 = vmatpush1.msra.mxu0 0.0
    %326 = vmatprep.mubr.f32.mxu0 0.0
    %327 = vmatmul.mubr.f32.gmra.mrb[0].mxu0 %v235
    %v328 = vpop.f32.mrb[0].mxu0
    %v329 = vadd.f32 %v260, %v328
    %v330 = vpop.f32.mrb[0].mxu0
    %331 = vmatprep.mubr.f32.mxu0 0.0
    %332 = vmatmul.mubr.f32.gmra.mrb[0].mxu0 %v236
    %v333 = vpop.f32.mrb[0].mxu0
    %v334 = vadd.f32 %v260, %v333
    %v335 = vpop.f32.mrb[0].mxu0
    %336 = vmatprep.mubr.f32.mxu0 0.0
    %337 = vmatmul.mubr.f32.gmra.mrb[0].mxu0 %v237
    %v338 = vpop.f32.mrb[0].mxu0
    %v339 = vadd.f32 %v260, %v338
    %v340 = vpop.f32.mrb[0].mxu0
    %341 = vmatprep.mubr.f32.mxu0 0.0
    %342 = vmatmul.mubr.f32.gmra.mrb[0].mxu0 %v238
    %v343 = vpop.f32.mrb[0].mxu0
    %v344 = vadd.f32 %v260, %v343
    %v345 = vpop.f32.mrb[0].mxu0
    %346 = vdwg.mxu0
    %v347 = vmul.f32 %v329, 0.2
    %v348 = vmul.f32 %v334, 0.2
    %v349 = vmul.f32 %v339, 0.2
    %v350 = vmul.f32 %v344, 0.2
    %v351 = vmax.f32 %v329, %v347
    %v352 = vmax.f32 %v334, %v348
    %v353 = vmax.f32 %v339, %v349
    %v354 = vmax.f32 %v344, %v350
    %355 = vst [vmem:[#allocation15] sm:$0xff] %v351
    %356 = vst [vmem:[#allocation15 + $0x8] sm:$0xff] %v352
    %357 = vst [vmem:[#allocation15 + $0x10] sm:$0xff] %v353
    %358 = vst [vmem:[#allocation15 + $0x18] sm:$0xff] %v354
    %v359 = vmax.f32 %v351, %v352
    %v360 = vrot.slane %v359, 4
    %v361 = vmax.f32 %v359, %v360
    %v362 = vrot.slane %v361, 2
    %v363 = vmax.f32 %v361, %v362
    %v364 = vrot.slane %v363, 1
    %v365 = vmax.f32 %v363, %v364
    %v366 = vmax.f32 %v353, %v354
    %v367 = vrot.slane %v366, 4
    %v368 = vmax.f32 %v366, %v367
    %v369 = vrot.slane %v368, 2
    %v370 = vmax.f32 %v368, %v369
    %v371 = vrot.slane %v370, 1
    %v372 = vmax.f32 %v370, %v371
    %v373 = vld [vmem:[#allocation11] sm:$0xff]
    %v374 = vld [vmem:[#allocation11 + $0x8] sm:$0xff]
    %v375 = vld [vmem:[#allocation11 + $0x10] sm:$0xff]
    %v376 = vld [vmem:[#allocation11 + $0x18] sm:$0xff]
    %v377 = vld [vmem:[#allocation11 + $0x20] sm:$0xff]
    %v378 = vld [vmem:[#allocation11 + $0x28] sm:$0xff]
    %v379 = vld [vmem:[#allocation11 + $0x30] sm:$0xff]
    %v380 = vld [vmem:[#allocation11 + $0x38] sm:$0xff]
    %v381 = vld [vmem:[#allocation11 + $0x40] sm:$0xff]
    %v382 = vld [vmem:[#allocation11 + $0x48] sm:$0xff]
    %v383 = vld [vmem:[#allocation11 + $0x50] sm:$0xff]
    %v384 = vld [vmem:[#allocation11 + $0x58] sm:$0xff]
    %v385 = vld [vmem:[#allocation11 + $0x60] sm:$0xff]
    %v386 = vld [vmem:[#allocation11 + $0x68] sm:$0xff]
    %v387 = vld [vmem:[#allocation11 + $0x70] sm:$0xff]
    %v388 = vld [vmem:[#allocation11 + $0x78] sm:$0xff]
    %v389 = vld [vmem:[#allocation13] sm:$0x1]
    %v391 = vlaneseq
    %v392 = vshrl.u32 %v391, 7
    %v393 = vsub.s32 0, %v392
    %v394 = vrot.slane %v389, %v393
    %vm398 = vcmask 1041409
    %v399 = vsel %vm398, %v372, %v365
    %401 = vmatprep.subr.mxu0 0.0
    %402 = vmatpush1.msra.mxu0 %v373
    %403 = vmatprep.subr.mxu0 0.0
    %404 = vmatpush1.msra.mxu0 %v374
    %405 = vmatprep.subr.mxu0 0.0
    %406 = vmatpush1.msra.mxu0 %v375
    %407 = vmatprep.subr.mxu0 0.0
    %408 = vmatpush1.msra.mxu0 %v376
    %409 = vmatprep.subr.mxu0 0.0
    %410 = vmatpush1.msra.mxu0 %v377
    %411 = vmatprep.subr.mxu0 0.0
    %412 = vmatpush1.msra.mxu0 %v378
    %413 = vmatprep.subr.mxu0 0.0
    %414 = vmatpush1.msra.mxu0 %v379
    %415 = vmatprep.subr.mxu0 0.0
    %416 = vmatpush1.msra.mxu0 %v380
    %417 = vmatprep.subr.mxu0 0.0
    %418 = vmatpush1.msra.mxu0 %v381
    %419 = vmatprep.subr.mxu0 0.0
    %420 = vmatpush1.msra.mxu0 %v382
    %421 = vmatprep.subr.mxu0 0.0
    %422 = vmatpush1.msra.mxu0 %v383
    %423 = vmatprep.subr.mxu0 0.0
    %424 = vmatpush1.msra.mxu0 %v384
    %425 = vmatprep.subr.mxu0 0.0
    %426 = vmatpush1.msra.mxu0 %v385
    %427 = vmatprep.subr.mxu0 0.0
    %428 = vmatpush1.msra.mxu0 %v386
    %429 = vmatprep.subr.mxu0 0.0
    %430 = vmatpush1.msra.mxu0 %v387
    %431 = vmatprep.subr.mxu0 0.0
    %432 = vmatpush1.msra.mxu0 %v388
    %433 = vmatprep.subr.mxu0 0.0
    %434 = vmatpush1.msra.mxu0 0.0
    %435 = vmatprep.subr.mxu0 0.0
    %436 = vmatpush1.msra.mxu0 0.0
    %437 = vmatprep.subr.mxu0 0.0
    %438 = vmatpush1.msra.mxu0 0.0
    %439 = vmatprep.subr.mxu0 0.0
    %440 = vmatpush1.msra.mxu0 0.0
    %441 = vmatprep.subr.mxu0 0.0
    %442 = vmatpush1.msra.mxu0 0.0
    %443 = vmatprep.subr.mxu0 0.0
    %444 = vmatpush1.msra.mxu0 0.0
    %445 = vmatprep.subr.mxu0 0.0
    %446 = vmatpush1.msra.mxu0 0.0
    %447 = vmatprep.subr.mxu0 0.0
    %448 = vmatpush1.msra.mxu0 0.0
    %449 = vmatprep.subr.mxu0 0.0
    %450 = vmatpush1.msra.mxu0 0.0
    %451 = vmatprep.subr.mxu0 0.0
    %452 = vmatpush1.msra.mxu0 0.0
    %453 = vmatprep.subr.mxu0 0.0
    %454 = vmatpush1.msra.mxu0 0.0
    %455 = vmatprep.subr.mxu0 0.0
    %456 = vmatpush1.msra.mxu0 0.0
    %457 = vmatprep.subr.mxu0 0.0
    %458 = vmatpush1.msra.mxu0 0.0
    %459 = vmatprep.subr.mxu0 0.0
    %460 = vmatpush1.msra.mxu0 0.0
    %461 = vmatprep.subr.mxu0 0.0
    %462 = vmatpush1.msra.mxu0 0.0
    %463 = vmatprep.subr.mxu0 0.0
    %464 = vmatpush1.msra.mxu0 0.0
    %465 = vmatprep.mubr.f32.mxu0 0.0
    %466 = vmatmul.mubr.f32.gmra.mrb[0].mxu0 %v399
    %v467 = vpop.f32.mrb[0].mxu0
    %v468 = vadd.f32 %v394, %v467
    %v469 = vpop.f32.mrb[0].mxu0
    %470 = vdwg.mxu0
    %v471 = vmul.f32 %v468, 0.2
    %v472 = vmax.f32 %v468, %v471
    %473 = vst [vmem:[#allocation14] sm:$0x3] %v472
    // Predicated region
    $region58: #{tpu_custom_call.1} parent=1 // pred_check
      _
    $region59: #{tpu_custom_call.1} parent=1 // pred_check_branch
      %475 = sbr.rel (0) target = $region61
    $region60: #{tpu_custom_call.1} parent=1 // pred_region
      %s477 = ssub.s32 32, 32
      %478 = vsyncadd [#allocation4], %s477
      %s480 = sshll.u32 [#allocation14], 4
      %s481 = int_to_ptr.vmem [resolvable:$true] %s480
      %483 = dma.vmem_to_hbm [thread:$0]  %s481, 32, %s7, [#allocation4]
    $region61: #{tpu_custom_call.1} parent=1 // pred_fallthru
      _
    // Predicated region
    $region62: #{tpu_custom_call.1} parent=1 // pred_check
      _
    $region63: #{tpu_custom_call.1} parent=1 // pred_check_branch
      %485 = sbr.rel (0) target = $region65
    $region64: #{tpu_custom_call.1} parent=1 // pred_region
      %s487 = ssub.s32 512, 512
      %488 = vsyncadd [#allocation16], %s487
      %s489 = sshll.u32 [#allocation15], 4
      %s490 = int_to_ptr.vmem [resolvable:$true] %s489
      %495 = dma.vmem_to_hbm [thread:$0]  %s490, 512, %s8, [#allocation16], 128, 128, 8
    $region65: #{tpu_custom_call.1} parent=1 // pred_fallthru
      _
    // Predicated region
    $region66: #{tpu_custom_call.1} parent=1 // pred_check
      _
    $region67: #{tpu_custom_call.1} parent=1 // pred_check_branch
      %497 = sbr.rel (0) target = $region69
    $region68: #{tpu_custom_call.1} parent=1 // pred_region
      %498 = dma.done [#allocation4], 32
    $region69: #{tpu_custom_call.1} parent=1 // pred_fallthru
      _
    // Predicated region
    $region70: #{tpu_custom_call.1} parent=1 // pred_check
      _
    $region71: #{tpu_custom_call.1} parent=1 // pred_check_branch
      %500 = sbr.rel (0) target = $region73
    $region72: #{tpu_custom_call.1} parent=1 // pred_region
      %501 = dma.done [#allocation16], 512
    $region73: #{tpu_custom_call.1} parent=1 // pred_fallthru
      _
    %502 = vsyncpa [#allocation3], 1
    %503 = vsyncpa [#allocation6], 1
    %504 = vsyncpa [#allocation9], 1
    %505 = vsyncpa [#allocation12], 1
    %506 = vsyncpa [#allocation4], 1
    %507 = vsyncpa [#allocation16], 1

</llo_original>
